<compile_context>
chip_gen: v5e
topology: v5e:2x2
jax: 0.10.0
libtpu: 0.0.40
codegen_flags: <defaults>
</compile_context>

<pallas_src>
import jax
import jax.numpy as jnp
from jax.experimental import pallas as pl
from jax.experimental.pallas import tpu as pltpu

# ----- model hyper-parameters (match the PyTorch module defaults) ------------
VOCAB_SIZE = 256          # len(vocab)  (small demo vocab; lane-aligned)
EMBED_DIM = 200           # nn.Embedding(vocab_size, 200)
CONTEXT = 2               # context_size
HIDDEN = 128              # linear1 output features (fixed in the module)

# ----- TPU layout constants ---------------------------------------------------
LANE = 128
SUBLANE = 8
D_PAD = ((EMBED_DIM + LANE - 1) // LANE) * LANE   # 200 -> 256 (lane aligned)
MAX_B_TILE = 256                                  # contexts per grid step (cap)


def _round_up(x, m):
    return ((x + m - 1) // m) * m


def _choose_b_tile(b):
    """Batch tile: as large as possible (MXU utilization) but keep >=2 grid
    steps for large batches so the parallel axis can use both TCs on v7x."""
    if b <= MAX_B_TILE:
        return _round_up(b, SUBLANE)
    return min(MAX_B_TILE, _round_up((b + 1) // 2, SUBLANE))


def _make_kernel(b_tile, context, d_pad, vocab, hidden):
    """Batched n-gram LM forward kernel (everything VMEM-resident).

    Refs:
      idx_ref : VMEM (b_tile, context) int32   token ids for this batch tile
      emb_ref : VMEM (vocab, d_pad)    f32     embedding table (resident)
      w1_ref  : VMEM (context*d_pad, hidden)   f32 (resident)
      b1_ref  : VMEM (1, hidden)       f32
      w2_ref  : VMEM (hidden, vocab)   f32 (resident)
      b2_ref  : VMEM (1, vocab)        f32
      out_ref : VMEM (b_tile, vocab)   f32     log-probabilities
    """

    def kernel(idx_ref, emb_ref, w1_ref, b1_ref, w2_ref, b2_ref, out_ref):
        ids = idx_ref[...]                                            # (b_tile, context)
        vocab_iota = jax.lax.broadcasted_iota(jnp.int32, (b_tile, vocab), 1)

        # ---- embedding gather + linear1, fused on the MXU:
        #      h = relu(b1 + sum_c  onehot_c @ emb @ W1[c])
        acc = jnp.zeros((b_tile, hidden), jnp.float32)
        for c in range(context):                                      # static unroll
            onehot = (ids[:, c:c + 1] == vocab_iota).astype(jnp.float32)      # (b_tile, V)
            x_c = jnp.dot(onehot, emb_ref[...],                                # (b_tile, d_pad)
                          preferred_element_type=jnp.float32)
            acc = acc + jnp.dot(x_c, w1_ref[c * d_pad:(c + 1) * d_pad, :],
                                preferred_element_type=jnp.float32)
        h = jnp.maximum(acc + b1_ref[...], 0.0)                       # (b_tile, hidden)

        # ---- linear2
        logits = jnp.dot(h, w2_ref[...], preferred_element_type=jnp.float32)
        logits = logits + b2_ref[...]                                 # (b_tile, vocab)

        # ---- log_softmax over the vocab axis (numerically stable, f32)
        m = jnp.max(logits, axis=1, keepdims=True)
        shifted = logits - m
        lse = jnp.log(jnp.sum(jnp.exp(shifted), axis=1, keepdims=True))
        out_ref[...] = shifted - lse

    return kernel


def prepare_params(emb, w1, b1, w2, b2):
    """One-time parameter prep (lane-padding 200 -> 256). Call OUTSIDE the
    per-forward path so no per-call HBM bandwidth is spent re-padding."""
    v, d = emb.shape
    h = w1.shape[1]
    assert d == EMBED_DIM and w1.shape[0] == CONTEXT * EMBED_DIM
    emb_p = jnp.zeros((v, D_PAD), jnp.float32).at[:, :d].set(emb.astype(jnp.float32))
    w1_p = jnp.zeros((CONTEXT * D_PAD, h), jnp.float32)
    for c in range(CONTEXT):
        w1_p = w1_p.at[c * D_PAD:c * D_PAD + d, :].set(
            w1[c * d:(c + 1) * d, :].astype(jnp.float32))
    return {
        "emb": emb_p,
        "w1": w1_p,
        "b1": jnp.asarray(b1, jnp.float32),
        "w2": jnp.asarray(w2, jnp.float32),
        "b2": jnp.asarray(b2, jnp.float32),
    }


def youtube_nn_forward(inputs, params):
    """Forward pass of YoutubeNeuralNetwork.

    inputs: (CONTEXT,) or (B, CONTEXT) int32 token indices.
    params: dict from prepare_params() (padded table / weights).

    Returns float32 log-probabilities: (1, V) for a single context (module
    semantics), or (B, V) for a batch of contexts.
    """
    inputs = jnp.asarray(inputs, jnp.int32)
    if inputs.ndim == 1:
        inputs = inputs[None, :]
    b, ctx = inputs.shape
    emb_p, w1_p = params["emb"], params["w1"]
    b1, w2, b2 = params["b1"], params["w2"], params["b2"]
    v = emb_p.shape[0]
    h = w1_p.shape[1]
    assert ctx == CONTEXT and emb_p.shape[1] == D_PAD and w1_p.shape[0] == CONTEXT * D_PAD

    # Clamp token ids (out-of-range would otherwise gather a zero row; PyTorch
    # would raise).
    inputs = jnp.clip(inputs, 0, v - 1)

    b_tile = _choose_b_tile(b)
    b_pad = _round_up(b, b_tile)
    idx = jnp.zeros((b_pad, CONTEXT), jnp.int32).at[:b, :].set(inputs)

    const = lambda i: (0, 0)          # weights / table stay VMEM-resident
    out = pl.pallas_call(
        _make_kernel(b_tile, CONTEXT, D_PAD, v, h),
        out_shape=jax.ShapeDtypeStruct((b_pad, v), jnp.float32),
        grid_spec=pltpu.PrefetchScalarGridSpec(
            num_scalar_prefetch=0,
            grid=(b_pad // b_tile,),
            in_specs=[
                pl.BlockSpec((b_tile, CONTEXT), lambda i: (i, 0)),   # token ids
                pl.BlockSpec((v, D_PAD), const),                     # embedding table
                pl.BlockSpec((CONTEXT * D_PAD, h), const),           # W1
                pl.BlockSpec((1, h), const),                         # b1
                pl.BlockSpec((h, v), const),                         # W2
                pl.BlockSpec((1, v), const),                         # b2
            ],
            out_specs=pl.BlockSpec((b_tile, v), lambda i: (i, 0)),
        ),
        compiler_params=pltpu.CompilerParams(
            dimension_semantics=("parallel",)),   # batch axis: both TCs on v7x
    )(idx, emb_p, w1_p, b1, w2, b2)

    return out[:b]


def _reference(inputs, emb, w1, b1, w2, b2):
    inputs = jnp.atleast_2d(jnp.asarray(inputs, jnp.int32))
    embeds = emb[inputs].reshape(inputs.shape[0], -1)
    hid = jnp.maximum(embeds @ w1 + b1, 0.0)
    logits = hid @ w2 + b2
    return jax.nn.log_softmax(logits, axis=1)


if __name__ == "__main__":
    key = jax.random.PRNGKey(0)
    k_emb, k_w1, k_b1, k_w2, k_b2, k_idx = jax.random.split(key, 6)

    # Deterministic parameter init (synthetic; no checkpoint load).
    emb = jax.random.normal(k_emb, (VOCAB_SIZE, EMBED_DIM), jnp.float32) * 0.1
    w1 = jax.random.normal(k_w1, (CONTEXT * EMBED_DIM, HIDDEN), jnp.float32) * 0.05
    b1 = jax.random.normal(k_b1, (1, HIDDEN), jnp.float32) * 0.01
    w2 = jax.random.normal(k_w2, (HIDDEN, VOCAB_SIZE), jnp.float32) * 0.05
    b2 = jax.random.normal(k_b2, (1, VOCAB_SIZE), jnp.float32) * 0.01

    # One-time parameter prep (padding hoisted out of the forward path).
    params = prepare_params(emb, w1, b1, w2, b2)

    # Batched contexts: each row is one independent forward of the module.
    batch = 16
    inputs = jax.random.randint(k_idx, (batch, CONTEXT), 0, VOCAB_SIZE, jnp.int32)

    fwd = jax.jit(youtube_nn_forward)
    log_probs = fwd(inputs, params)
    jax.block_until_ready(log_probs)

    ref = _reference(inputs, emb, w1, b1, w2, b2)
    assert log_probs.shape == (batch, VOCAB_SIZE)
    assert jnp.allclose(log_probs, ref, atol=2e-4, rtol=2e-4), "batched mismatch vs reference"

    # Single-context call: exactly the module's forward signature / (1, V) output.
    single = fwd(inputs[0], params)
    jax.block_until_ready(single)
    assert single.shape == (1, VOCAB_SIZE)
    assert jnp.allclose(single, ref[0:1], atol=2e-4, rtol=2e-4), "single mismatch vs reference"

    print("KERNEL_OK")
</pallas_src>

<mosaic_0001>
module attributes {stable_mosaic.version = 11 : i64} {
  func.func @kernel(%arg0: i32, %arg1: memref<16x2xi32, #tpu.memory_space<vmem>>, %arg2: memref<256x256xf32, #tpu.memory_space<vmem>>, %arg3: memref<512x128xf32, #tpu.memory_space<vmem>>, %arg4: memref<1x128xf32, #tpu.memory_space<vmem>>, %arg5: memref<128x256xf32, #tpu.memory_space<vmem>>, %arg6: memref<1x256xf32, #tpu.memory_space<vmem>>, %arg7: memref<16x256xf32, #tpu.memory_space<vmem>>) attributes {dimension_semantics = [#tpu.dimension_semantics<parallel>], iteration_bounds = array<i64: 1>, scalar_prefetch = 0 : i64, scratch_operands = 0 : i64, tpu.core_type = #tpu.core_type<tc>, window_params = [{transform_indices = @transform_0, window_bounds = array<i64: 16, 2>}, {pipeline_mode = #tpu.pipeline_mode<synchronous>, transform_indices = @transform_1, window_bounds = array<i64: 256, 256>}, {pipeline_mode = #tpu.pipeline_mode<synchronous>, transform_indices = @transform_2, window_bounds = array<i64: 512, 128>}, {pipeline_mode = #tpu.pipeline_mode<synchronous>, transform_indices = @transform_3, window_bounds = array<i64: 1, 128>}, {pipeline_mode = #tpu.pipeline_mode<synchronous>, transform_indices = @transform_4, window_bounds = array<i64: 128, 256>}, {pipeline_mode = #tpu.pipeline_mode<synchronous>, transform_indices = @transform_5, window_bounds = array<i64: 1, 256>}, {transform_indices = @transform_6, window_bounds = array<i64: 16, 256>}]} {
    %c0 = arith.constant 0 : index
    %c0_0 = arith.constant 0 : index
    %0 = vector.load %arg1[%c0, %c0_0] : memref<16x2xi32, #tpu.memory_space<vmem>>, vector<16x2xi32>
    %1 = tpu.iota {dimensions = array<i32: 1>} : vector<16x256xi32>
    %cst = arith.constant 0.000000e+00 : f32
    %2 = vector.broadcast %cst : f32 to vector<16x128xf32>
    %3 = vector.extract_strided_slice %0 {offsets = [0, 0], sizes = [16, 1], strides = [1, 1]} : vector<16x2xi32> to vector<16x1xi32>
    %4 = vector.broadcast %3 : vector<16x1xi32> to vector<16x256xi32>
    %5 = arith.cmpi eq, %4, %1 : vector<16x256xi32>
    %6 = arith.extui %5 : vector<16x256xi1> to vector<16x256xi32>
    %7 = arith.sitofp %6 : vector<16x256xi32> to vector<16x256xf32>
    %c0_1 = arith.constant 0 : index
    %c0_2 = arith.constant 0 : index
    %8 = vector.load %arg2[%c0_1, %c0_2] : memref<256x256xf32, #tpu.memory_space<vmem>>, vector<256x256xf32>
    %cst_3 = arith.constant dense<0.000000e+00> : vector<16x256xf32>
    %9 = tpu.matmul %7, %8, %cst_3 {dimension_numbers = #tpu.dot_dimension_numbers<[1], [0], [0], [1], [0, 0, 1, 1], [], []>} : vector<16x256xf32>, vector<256x256xf32>, vector<16x256xf32> -> vector<16x256xf32>
    %c0_4 = arith.constant 0 : index
    %c0_5 = arith.constant 0 : index
    %10 = vector.load %arg3[%c0_4, %c0_5] : memref<512x128xf32, #tpu.memory_space<vmem>>, vector<256x128xf32>
    %cst_6 = arith.constant dense<0.000000e+00> : vector<16x128xf32>
    %11 = tpu.matmul %9, %10, %cst_6 {dimension_numbers = #tpu.dot_dimension_numbers<[1], [0], [0], [1], [0, 0, 1, 1], [], []>} : vector<16x256xf32>, vector<256x128xf32>, vector<16x128xf32> -> vector<16x128xf32>
    %12 = arith.addf %2, %11 : vector<16x128xf32>
    %13 = vector.extract_strided_slice %0 {offsets = [0, 1], sizes = [16, 1], strides = [1, 1]} : vector<16x2xi32> to vector<16x1xi32>
    %14 = vector.broadcast %13 : vector<16x1xi32> to vector<16x256xi32>
    %15 = arith.cmpi eq, %14, %1 : vector<16x256xi32>
    %16 = arith.extui %15 : vector<16x256xi1> to vector<16x256xi32>
    %17 = arith.sitofp %16 : vector<16x256xi32> to vector<16x256xf32>
    %c0_7 = arith.constant 0 : index
    %c0_8 = arith.constant 0 : index
    %18 = vector.load %arg2[%c0_7, %c0_8] : memref<256x256xf32, #tpu.memory_space<vmem>>, vector<256x256xf32>
    %cst_9 = arith.constant dense<0.000000e+00> : vector<16x256xf32>
    %19 = tpu.matmul %17, %18, %cst_9 {dimension_numbers = #tpu.dot_dimension_numbers<[1], [0], [0], [1], [0, 0, 1, 1], [], []>} : vector<16x256xf32>, vector<256x256xf32>, vector<16x256xf32> -> vector<16x256xf32>
    %c256 = arith.constant 256 : index
    %c0_10 = arith.constant 0 : index
    %20 = vector.load %arg3[%c256, %c0_10] : memref<512x128xf32, #tpu.memory_space<vmem>>, vector<256x128xf32>
    %cst_11 = arith.constant dense<0.000000e+00> : vector<16x128xf32>
    %21 = tpu.matmul %19, %20, %cst_11 {dimension_numbers = #tpu.dot_dimension_numbers<[1], [0], [0], [1], [0, 0, 1, 1], [], []>} : vector<16x256xf32>, vector<256x128xf32>, vector<16x128xf32> -> vector<16x128xf32>
    %22 = arith.addf %12, %21 : vector<16x128xf32>
    %c0_12 = arith.constant 0 : index
    %c0_13 = arith.constant 0 : index
    %23 = vector.load %arg4[%c0_12, %c0_13] : memref<1x128xf32, #tpu.memory_space<vmem>>, vector<1x128xf32>
    %24 = vector.broadcast %23 : vector<1x128xf32> to vector<16x128xf32>
    %25 = arith.addf %22, %24 : vector<16x128xf32>
    %cst_14 = arith.constant 0.000000e+00 : f32
    %26 = vector.broadcast %cst_14 : f32 to vector<16x128xf32>
    %27 = arith.maximumf %25, %26 : vector<16x128xf32>
    %c0_15 = arith.constant 0 : index
    %c0_16 = arith.constant 0 : index
    %28 = vector.load %arg5[%c0_15, %c0_16] : memref<128x256xf32, #tpu.memory_space<vmem>>, vector<128x256xf32>
    %cst_17 = arith.constant dense<0.000000e+00> : vector<16x256xf32>
    %29 = tpu.matmul %27, %28, %cst_17 {dimension_numbers = #tpu.dot_dimension_numbers<[1], [0], [0], [1], [0, 0, 1, 1], [], []>} : vector<16x128xf32>, vector<128x256xf32>, vector<16x256xf32> -> vector<16x256xf32>
    %c0_18 = arith.constant 0 : index
    %c0_19 = arith.constant 0 : index
    %30 = vector.load %arg6[%c0_18, %c0_19] : memref<1x256xf32, #tpu.memory_space<vmem>>, vector<1x256xf32>
    %31 = vector.broadcast %30 : vector<1x256xf32> to vector<16x256xf32>
    %32 = arith.addf %29, %31 : vector<16x256xf32>
    %cst_20 = arith.constant dense<0xFF800000> : vector<16xf32>
    %33 = vector.multi_reduction <maximumf>, %32, %cst_20 [1] : vector<16x256xf32> to vector<16xf32>
    %34 = vector.shape_cast %33 : vector<16xf32> to vector<16x1xf32>
    %35 = vector.broadcast %34 : vector<16x1xf32> to vector<16x256xf32>
    %36 = arith.subf %32, %35 : vector<16x256xf32>
    %37 = math.exp %36 : vector<16x256xf32>
    %cst_21 = arith.constant dense<0.000000e+00> : vector<16xf32>
    %38 = vector.multi_reduction <add>, %37, %cst_21 [1] : vector<16x256xf32> to vector<16xf32>
    %39 = vector.shape_cast %38 : vector<16xf32> to vector<16x1xf32>
    %40 = math.log %39 : vector<16x1xf32>
    %41 = vector.broadcast %40 : vector<16x1xf32> to vector<16x256xf32>
    %42 = arith.subf %36, %41 : vector<16x256xf32>
    %c0_22 = arith.constant 0 : index
    %c0_23 = arith.constant 0 : index
    %43 = vector.load %arg7[%c0_22, %c0_23] : memref<16x256xf32, #tpu.memory_space<vmem>>, vector<16x256xf32>
    tpu.vector_store %arg7[%c0_22, %c0_23], %42 {strides = array<i32>} : memref<16x256xf32, #tpu.memory_space<vmem>>, vector<16x256xf32>,
    return
  }
  func.func @transform_0(%arg0: i32) -> (i32, i32) {
    %c0_i32 = arith.constant 0 : i32
    %c0_i32_0 = arith.constant 0 : i32
    return %arg0, %c0_i32 : i32, i32
  }
  func.func @transform_1(%arg0: i32) -> (i32, i32) {
    %c0_i32 = arith.constant 0 : i32
    %c0_i32_0 = arith.constant 0 : i32
    %c0_i32_1 = arith.constant 0 : i32
    return %c0_i32, %c0_i32_0 : i32, i32
  }
  func.func @transform_2(%arg0: i32) -> (i32, i32) {
    %c0_i32 = arith.constant 0 : i32
    %c0_i32_0 = arith.constant 0 : i32
    %c0_i32_1 = arith.constant 0 : i32
    return %c0_i32, %c0_i32_0 : i32, i32
  }
  func.func @transform_3(%arg0: i32) -> (i32, i32) {
    %c0_i32 = arith.constant 0 : i32
    %c0_i32_0 = arith.constant 0 : i32
    %c0_i32_1 = arith.constant 0 : i32
    return %c0_i32, %c0_i32_0 : i32, i32
  }
  func.func @transform_4(%arg0: i32) -> (i32, i32) {
    %c0_i32 = arith.constant 0 : i32
    %c0_i32_0 = arith.constant 0 : i32
    %c0_i32_1 = arith.constant 0 : i32
    return %c0_i32, %c0_i32_0 : i32, i32
  }
  func.func @transform_5(%arg0: i32) -> (i32, i32) {
    %c0_i32 = arith.constant 0 : i32
    %c0_i32_0 = arith.constant 0 : i32
    %c0_i32_1 = arith.constant 0 : i32
    return %c0_i32, %c0_i32_0 : i32, i32
  }
  func.func @transform_6(%arg0: i32) -> (i32, i32) {
    %c0_i32 = arith.constant 0 : i32
    %c0_i32_0 = arith.constant 0 : i32
    return %arg0, %c0_i32 : i32, i32
  }
}

</mosaic_0001>

<llo_original>
// kernel: youtube_nn_forward.1
$region0: #{youtube_nn_forward.1}
  #allocation0 [shape = 'u32[]', space=smem, size = 0x4, offset = 0x4, fixed_abs, tag = 'smem constant byte address 0x4 - core index']
  #allocation1 [shape = 'u32[72,128]{1,0:T(1,128)}', space=vmem, size = 0x9000, scoped, tag = 'internal scratch']
  %s0 = inlined_call_operand.vmem [shape: s32[16,2], index: 0, kind: input, shape index: {}]
  %s1 = inlined_call_operand.hbm [shape: f32[256,256], index: 1, kind: input, shape index: {}]
  %s2 = inlined_call_operand.hbm [shape: f32[512,128], index: 2, kind: input, shape index: {}]
  %s3 = inlined_call_operand.vmem [shape: f32[1,128], index: 3, kind: input, shape index: {}]
  %s4 = inlined_call_operand.hbm [shape: f32[128,256], index: 4, kind: input, shape index: {}]
  %s5 = inlined_call_operand.vmem [shape: f32[1,256], index: 5, kind: input, shape index: {}]
  %s6 = inlined_call_operand.hbm [shape: f32[16,256], index: 6, kind: output, shape index: {}]
  %s7 = sld [smem:[#allocation0]]
  $region46: #{youtube_nn_forward.1} parent=0
    _
  %s9 = ssub.s32 1, %s7
  %s10 = scalar_select 0, %s9, %s7
  $region1: #{youtube_nn_forward.1} parent=0
    #allocation2 [shape = 'u8[262144]{0}', space=vmem, size = 0x40000, scoped, tag = 'input window, operand 1, single buffered']
    #allocation3 [shape = 's32[1]{0}', space=sflag, size = 0x4, scoped, tag = 'scoped memory for youtube_nn_forward.1']
    #allocation4 [shape = 's32[1]{0}', space=sflag, size = 0x4, scoped, tag = 'scoped memory for youtube_nn_forward.1']
    #allocation5 [shape = 'u8[262144]{0}', space=vmem, size = 0x40000, scoped, tag = 'input window, operand 2, single buffered']
    #allocation6 [shape = 's32[1]{0}', space=sflag, size = 0x4, scoped, tag = 'scoped memory for youtube_nn_forward.1']
    #allocation7 [shape = 'u8[131072]{0}', space=vmem, size = 0x20000, scoped, tag = 'input window, operand 4, single buffered']
    #allocation8 [shape = 'u8[16384]{0}', space=vmem, size = 0x4000, scoped, tag = 'output window, operand 0, single buffered']
    %11 = vsyncpa [#allocation3], 0
    %12 = vsyncpa [#allocation6], 0
    %13 = vsyncpa [#allocation4], 0
    // Predicated region
    $region2: #{youtube_nn_forward.1} parent=1 // pred_check
      _
    $region3: #{youtube_nn_forward.1} parent=1 // pred_check_branch
      %15 = sbr.rel (0) target = $region5
    $region4: #{youtube_nn_forward.1} parent=1 // pred_region
      _
    $region5: #{youtube_nn_forward.1} parent=1 // pred_fallthru
      _
    // Predicated region
    $region6: #{youtube_nn_forward.1} parent=1 // pred_check
      _
    $region7: #{youtube_nn_forward.1} parent=1 // pred_check_branch
      %17 = sbr.rel (0) target = $region9
    $region8: #{youtube_nn_forward.1} parent=1 // pred_region
      %19 = vsyncadd [#allocation3], 0
      %s20 = sshll.u32 %s1, 4
      %s21 = int_to_ptr.hbm [resolvable:$true] %s20
      %s22 = sshll.u32 [#allocation2], 4
      %s23 = int_to_ptr.vmem [resolvable:$true] %s22
      %28 = dma.hbm_to_vmem [thread:$0]  %s21, 8192, %s23, [#allocation3], 256, 256, 16
    $region9: #{youtube_nn_forward.1} parent=1 // pred_fallthru
      _
    // Predicated region
    $region10: #{youtube_nn_forward.1} parent=1 // pred_check
      _
    $region11: #{youtube_nn_forward.1} parent=1 // pred_check_branch
      %30 = sbr.rel (0) target = $region13
    $region12: #{youtube_nn_forward.1} parent=1 // pred_region
      %32 = vsyncadd [#allocation6], 0
      %s33 = sshll.u32 %s2, 4
      %s34 = int_to_ptr.hbm [resolvable:$true] %s33
      %s35 = sshll.u32 [#allocation5], 4
      %s36 = int_to_ptr.vmem [resolvable:$true] %s35
      %41 = dma.hbm_to_vmem [thread:$0]  %s34, 8192, %s36, [#allocation6], 128, 128, 8
    $region13: #{youtube_nn_forward.1} parent=1 // pred_fallthru
      _
    // Predicated region
    $region14: #{youtube_nn_forward.1} parent=1 // pred_check
      _
    $region15: #{youtube_nn_forward.1} parent=1 // pred_check_branch
      %43 = sbr.rel (0) target = $region17
    $region16: #{youtube_nn_forward.1} parent=1 // pred_region
      _
    $region17: #{youtube_nn_forward.1} parent=1 // pred_fallthru
      _
    // Predicated region
    $region18: #{youtube_nn_forward.1} parent=1 // pred_check
      _
    $region19: #{youtube_nn_forward.1} parent=1 // pred_check_branch
      %45 = sbr.rel (0) target = $region21
    $region20: #{youtube_nn_forward.1} parent=1 // pred_region
      %47 = vsyncadd [#allocation6], 0
      %s48 = sshll.u32 %s4, 4
      %s49 = int_to_ptr.hbm [resolvable:$true] %s48
      %s50 = sshll.u32 [#allocation7], 4
      %s51 = int_to_ptr.vmem [resolvable:$true] %s50
      %56 = dma.hbm_to_vmem [thread:$0]  %s49, 4096, %s51, [#allocation6], 256, 256, 16
    $region21: #{youtube_nn_forward.1} parent=1 // pred_fallthru
      _
    // Predicated region
    $region22: #{youtube_nn_forward.1} parent=1 // pred_check
      _
    $region23: #{youtube_nn_forward.1} parent=1 // pred_check_branch
      %58 = sbr.rel (0) target = $region25
    $region24: #{youtube_nn_forward.1} parent=1 // pred_region
      _
    $region25: #{youtube_nn_forward.1} parent=1 // pred_fallthru
      _
    // Predicated region
    $region26: #{youtube_nn_forward.1} parent=1 // pred_check
      _
    $region27: #{youtube_nn_forward.1} parent=1 // pred_check_branch
      %60 = sbr.rel (0) target = $region29
    $region28: #{youtube_nn_forward.1} parent=1 // pred_region
      %62 = dma.done [#allocation3], 8192
    $region29: #{youtube_nn_forward.1} parent=1 // pred_fallthru
      _
    // Predicated region
    $region30: #{youtube_nn_forward.1} parent=1 // pred_check
      _
    $region31: #{youtube_nn_forward.1} parent=1 // pred_check_branch
      %64 = sbr.rel (0) target = $region33
    $region32: #{youtube_nn_forward.1} parent=1 // pred_region
      %66 = dma.done [#allocation6], 8192
    $region33: #{youtube_nn_forward.1} parent=1 // pred_fallthru
      _
    // Predicated region
    $region34: #{youtube_nn_forward.1} parent=1 // pred_check
      _
    $region35: #{youtube_nn_forward.1} parent=1 // pred_check_branch
      %68 = sbr.rel (0) target = $region37
    $region36: #{youtube_nn_forward.1} parent=1 // pred_region
      %70 = dma.done [#allocation6], 4096
    $region37: #{youtube_nn_forward.1} parent=1 // pred_fallthru
      _
    %v71 = vld [vmem:[%s0] sm:$0xff]
    %v72 = vld [vmem:[%s0 + $0x8] sm:$0xff]
    %v73 = vlaneseq
    %v74 = vand.u32 %v73, 127
    %v75 = vadd.s32 %v74, 128
    %76 = vset.pattern.permute.xlu0 0
    %77 = vperm.xlu0 %76, %v71
    %v78 = vpop.permute.xlu0 %77
    %79 = vset.pattern.permute.xlu0 0
    %80 = vperm.xlu0 %79, %v72
    %v81 = vpop.permute.xlu0 %80
    %vm82 = vcmp.eq.s32.totalorder %v78, %v74
    %vm83 = vcmp.eq.s32.totalorder %v78, %v75
    %vm84 = vcmp.eq.s32.totalorder %v81, %v74
    %vm85 = vcmp.eq.s32.totalorder %v81, %v75
    %v86 = vsel %vm82, 1, 0
    %v87 = vsel %vm83, 1, 0
    %v88 = vsel %vm84, 1, 0
    %v89 = vsel %vm85, 1, 0
    %v90 = vcvt.s32.f32 %v86
    %v91 = vcvt.s32.f32 %v87
    %v92 = vcvt.s32.f32 %v88
    %v93 = vcvt.s32.f32 %v89
    %v94 = vld [vmem:[#allocation2] sm:$0xff]
    %v95 = vld [vmem:[#allocation2 + $0x8] sm:$0xff]
    %v96 = vld [vmem:[#allocation2 + $0x10] sm:$0xff]
    %v97 = vld [vmem:[#allocation2 + $0x18] sm:$0xff]
    %v98 = vld [vmem:[#allocation2 + $0x20] sm:$0xff]
    %v99 = vld [vmem:[#allocation2 + $0x28] sm:$0xff]
    %v100 = vld [vmem:[#allocation2 + $0x30] sm:$0xff]
    %v101 = vld [vmem:[#allocation2 + $0x38] sm:$0xff]
    %v102 = vld [vmem:[#allocation2 + $0x40] sm:$0xff]
    %v103 = vld [vmem:[#allocation2 + $0x48] sm:$0xff]
    %v104 = vld [vmem:[#allocation2 + $0x50] sm:$0xff]
    %v105 = vld [vmem:[#allocation2 + $0x58] sm:$0xff]
    %v106 = vld [vmem:[#allocation2 + $0x60] sm:$0xff]
    %v107 = vld [vmem:[#allocation2 + $0x68] sm:$0xff]
    %v108 = vld [vmem:[#allocation2 + $0x70] sm:$0xff]
    %v109 = vld [vmem:[#allocation2 + $0x78] sm:$0xff]
    %v110 = vld [vmem:[#allocation2 + $0x80] sm:$0xff]
    %v111 = vld [vmem:[#allocation2 + $0x88] sm:$0xff]
    %v112 = vld [vmem:[#allocation2 + $0x90] sm:$0xff]
    %v113 = vld [vmem:[#allocation2 + $0x98] sm:$0xff]
    %v114 = vld [vmem:[#allocation2 + $0xa0] sm:$0xff]
    %v115 = vld [vmem:[#allocation2 + $0xa8] sm:$0xff]
    %v116 = vld [vmem:[#allocation2 + $0xb0] sm:$0xff]
    %v117 = vld [vmem:[#allocation2 + $0xb8] sm:$0xff]
    %v118 = vld [vmem:[#allocation2 + $0xc0] sm:$0xff]
    %v119 = vld [vmem:[#allocation2 + $0xc8] sm:$0xff]
    %v120 = vld [vmem:[#allocation2 + $0xd0] sm:$0xff]
    %v121 = vld [vmem:[#allocation2 + $0xd8] sm:$0xff]
    %v122 = vld [vmem:[#allocation2 + $0xe0] sm:$0xff]
    %v123 = vld [vmem:[#allocation2 + $0xe8] sm:$0xff]
    %v124 = vld [vmem:[#allocation2 + $0xf0] sm:$0xff]
    %v125 = vld [vmem:[#allocation2 + $0xf8] sm:$0xff]
    %v126 = vld [vmem:[#allocation2 + $0x100] sm:$0xff]
    %v127 = vld [vmem:[#allocation2 + $0x108] sm:$0xff]
    %v128 = vld [vmem:[#allocation2 + $0x110] sm:$0xff]
    %v129 = vld [vmem:[#allocation2 + $0x118] sm:$0xff]
    %v130 = vld [vmem:[#allocation2 + $0x120] sm:$0xff]
    %v131 = vld [vmem:[#allocation2 + $0x128] sm:$0xff]
    %v132 = vld [vmem:[#allocation2 + $0x130] sm:$0xff]
    %v133 = vld [vmem:[#allocation2 + $0x138] sm:$0xff]
    %v134 = vld [vmem:[#allocation2 + $0x140] sm:$0xff]
    %v135 = vld [vmem:[#allocation2 + $0x148] sm:$0xff]
    %v136 = vld [vmem:[#allocation2 + $0x150] sm:$0xff]
    %v137 = vld [vmem:[#allocation2 + $0x158] sm:$0xff]
    %v138 = vld [vmem:[#allocation2 + $0x160] sm:$0xff]
    %v139 = vld [vmem:[#allocation2 + $0x168] sm:$0xff]
    %v140 = vld [vmem:[#allocation2 + $0x170] sm:$0xff]
    %v141 = vld [vmem:[#allocation2 + $0x178] sm:$0xff]
    %v142 = vld [vmem:[#allocation2 + $0x180] sm:$0xff]
    %v143 = vld [vmem:[#allocation2 + $0x188] sm:$0xff]
    %v144 = vld [vmem:[#allocation2 + $0x190] sm:$0xff]
    %v145 = vld [vmem:[#allocation2 + $0x198] sm:$0xff]
    %v146 = vld [vmem:[#allocation2 + $0x1a0] sm:$0xff]
    %v147 = vld [vmem:[#allocation2 + $0x1a8] sm:$0xff]
    %v148 = vld [vmem:[#allocation2 + $0x1b0] sm:$0xff]
    %v149 = vld [vmem:[#allocation2 + $0x1b8] sm:$0xff]
    %v150 = vld [vmem:[#allocation2 + $0x1c0] sm:$0xff]
    %v151 = vld [vmem:[#allocation2 + $0x1c8] sm:$0xff]
    %v152 = vld [vmem:[#allocation2 + $0x1d0] sm:$0xff]
    %v153 = vld [vmem:[#allocation2 + $0x1d8] sm:$0xff]
    %v154 = vld [vmem:[#allocation2 + $0x1e0] sm:$0xff]
    %v155 = vld [vmem:[#allocation2 + $0x1e8] sm:$0xff]
    %v156 = vld [vmem:[#allocation2 + $0x1f0] sm:$0xff]
    %v157 = vld [vmem:[#allocation2 + $0x1f8] sm:$0xff]
    %158 = vmatpush.msra.mxu0 %v124
    %159 = vmatpush.msra.mxu0 %v122
    %160 = vmatpush.msra.mxu0 %v120
    %161 = vmatpush.msra.mxu0 %v118
    %162 = vmatpush.msra.mxu0 %v116
    %163 = vmatpush.msra.mxu0 %v114
    %164 = vmatpush.msra.mxu0 %v112
    %165 = vmatpush.msra.mxu0 %v110
    %166 = vmatpush.msra.mxu0 %v108
    %167 = vmatpush.msra.mxu0 %v106
    %168 = vmatpush.msra.mxu0 %v104
    %169 = vmatpush.msra.mxu0 %v102
    %170 = vmatpush.msra.mxu0 %v100
    %171 = vmatpush.msra.mxu0 %v98
    %172 = vmatpush.msra.mxu0 %v96
    %173 = vmatpush.msra.mxu0 %v94
    %174 = vmatmul.f32.gmra.mxu0 %v90
    %v175 = vpop.f32.mrf.mxu0
    %v176 = vadd.f32 0.0, %v175
    %177 = vmatmul.f32.gmra.mxu0 %v92
    %v178 = vpop.f32.mrf.mxu0
    %v179 = vadd.f32 0.0, %v178
    %180 = vdwg.mxu0
    %181 = vmatpush.msra.mxu0 %v156
    %182 = vmatpush.msra.mxu0 %v154
    %183 = vmatpush.msra.mxu0 %v152
    %184 = vmatpush.msra.mxu0 %v150
    %185 = vmatpush.msra.mxu0 %v148
    %186 = vmatpush.msra.mxu0 %v146
    %187 = vmatpush.msra.mxu0 %v144
    %188 = vmatpush.msra.mxu0 %v142
    %189 = vmatpush.msra.mxu0 %v140
    %190 = vmatpush.msra.mxu0 %v138
    %191 = vmatpush.msra.mxu0 %v136
    %192 = vmatpush.msra.mxu0 %v134
    %193 = vmatpush.msra.mxu0 %v132
    %194 = vmatpush.msra.mxu0 %v130
    %195 = vmatpush.msra.mxu0 %v128
    %196 = vmatpush.msra.mxu0 %v126
    %197 = vmatmul.f32.gmra.mxu0 %v91
    %v198 = vpop.f32.mrf.mxu0
    %v199 = vadd.f32 %v176, %v198
    %200 = vmatmul.f32.gmra.mxu0 %v93
    %v201 = vpop.f32.mrf.mxu0
    %v202 = vadd.f32 %v179, %v201
    %203 = vdwg.mxu0
    %204 = vmatpush.msra.mxu0 %v125
    %205 = vmatpush.msra.mxu0 %v123
    %206 = vmatpush.msra.mxu0 %v121
    %207 = vmatpush.msra.mxu0 %v119
    %208 = vmatpush.msra.mxu0 %v117
    %209 = vmatpush.msra.mxu0 %v115
    %210 = vmatpush.msra.mxu0 %v113
    %211 = vmatpush.msra.mxu0 %v111
    %212 = vmatpush.msra.mxu0 %v109
    %213 = vmatpush.msra.mxu0 %v107
    %214 = vmatpush.msra.mxu0 %v105
    %215 = vmatpush.msra.mxu0 %v103
    %216 = vmatpush.msra.mxu0 %v101
    %217 = vmatpush.msra.mxu0 %v99
    %218 = vmatpush.msra.mxu0 %v97
    %219 = vmatpush.msra.mxu0 %v95
    %220 = vmatmul.f32.gmra.mxu0 %v90
    %v221 = vpop.f32.mrf.mxu0
    %v222 = vadd.f32 0.0, %v221
    %223 = vmatmul.f32.gmra.mxu0 %v92
    %v224 = vpop.f32.mrf.mxu0
    %v225 = vadd.f32 0.0, %v224
    %226 = vdwg.mxu0
    %227 = vmatpush.msra.mxu0 %v157
    %228 = vmatpush.msra.mxu0 %v155
    %229 = vmatpush.msra.mxu0 %v153
    %230 = vmatpush.msra.mxu0 %v151
    %231 = vmatpush.msra.mxu0 %v149
    %232 = vmatpush.msra.mxu0 %v147
    %233 = vmatpush.msra.mxu0 %v145
    %234 = vmatpush.msra.mxu0 %v143
    %235 = vmatpush.msra.mxu0 %v141
    %236 = vmatpush.msra.mxu0 %v139
    %237 = vmatpush.msra.mxu0 %v137
    %238 = vmatpush.msra.mxu0 %v135
    %239 = vmatpush.msra.mxu0 %v133
    %240 = vmatpush.msra.mxu0 %v131
    %241 = vmatpush.msra.mxu0 %v129
    %242 = vmatpush.msra.mxu0 %v127
    %243 = vmatmul.f32.gmra.mxu0 %v91
    %v244 = vpop.f32.mrf.mxu0
    %v245 = vadd.f32 %v222, %v244
    %246 = vmatmul.f32.gmra.mxu0 %v93
    %v247 = vpop.f32.mrf.mxu0
    %v248 = vadd.f32 %v225, %v247
    %249 = vdwg.mxu0
    %v250 = vld [vmem:[#allocation5] sm:$0xff]
    %v251 = vld [vmem:[#allocation5 + $0x8] sm:$0xff]
    %v252 = vld [vmem:[#allocation5 + $0x10] sm:$0xff]
    %v253 = vld [vmem:[#allocation5 + $0x18] sm:$0xff]
    %v254 = vld [vmem:[#allocation5 + $0x20] sm:$0xff]
    %v255 = vld [vmem:[#allocation5 + $0x28] sm:$0xff]
    %v256 = vld [vmem:[#allocation5 + $0x30] sm:$0xff]
    %v257 = vld [vmem:[#allocation5 + $0x38] sm:$0xff]
    %v258 = vld [vmem:[#allocation5 + $0x40] sm:$0xff]
    %v259 = vld [vmem:[#allocation5 + $0x48] sm:$0xff]
    %v260 = vld [vmem:[#allocation5 + $0x50] sm:$0xff]
    %v261 = vld [vmem:[#allocation5 + $0x58] sm:$0xff]
    %v262 = vld [vmem:[#allocation5 + $0x60] sm:$0xff]
    %v263 = vld [vmem:[#allocation5 + $0x68] sm:$0xff]
    %v264 = vld [vmem:[#allocation5 + $0x70] sm:$0xff]
    %v265 = vld [vmem:[#allocation5 + $0x78] sm:$0xff]
    %v266 = vld [vmem:[#allocation5 + $0x80] sm:$0xff]
    %v267 = vld [vmem:[#allocation5 + $0x88] sm:$0xff]
    %v268 = vld [vmem:[#allocation5 + $0x90] sm:$0xff]
    %v269 = vld [vmem:[#allocation5 + $0x98] sm:$0xff]
    %v270 = vld [vmem:[#allocation5 + $0xa0] sm:$0xff]
    %v271 = vld [vmem:[#allocation5 + $0xa8] sm:$0xff]
    %v272 = vld [vmem:[#allocation5 + $0xb0] sm:$0xff]
    %v273 = vld [vmem:[#allocation5 + $0xb8] sm:$0xff]
    %v274 = vld [vmem:[#allocation5 + $0xc0] sm:$0xff]
    %v275 = vld [vmem:[#allocation5 + $0xc8] sm:$0xff]
    %v276 = vld [vmem:[#allocation5 + $0xd0] sm:$0xff]
    %v277 = vld [vmem:[#allocation5 + $0xd8] sm:$0xff]
    %v278 = vld [vmem:[#allocation5 + $0xe0] sm:$0xff]
    %v279 = vld [vmem:[#allocation5 + $0xe8] sm:$0xff]
    %v280 = vld [vmem:[#allocation5 + $0xf0] sm:$0xff]
    %v281 = vld [vmem:[#allocation5 + $0xf8] sm:$0xff]
    %282 = vset.pattern.permute.xlu0 1
    %283 = vperm.xlu0 %282, %v71
    %v284 = vpop.permute.xlu0 %283
    %285 = vset.pattern.permute.xlu0 1
    %286 = vperm.xlu0 %285, %v72
    %v287 = vpop.permute.xlu0 %286
    %vm288 = vcmp.eq.s32.totalorder %v284, %v74
    %vm289 = vcmp.eq.s32.totalorder %v284, %v75
    %vm290 = vcmp.eq.s32.totalorder %v287, %v74
    %vm291 = vcmp.eq.s32.totalorder %v287, %v75
    %v292 = vsel %vm288, 1, 0
    %v293 = vsel %vm289, 1, 0
    %v294 = vsel %vm290, 1, 0
    %v295 = vsel %vm291, 1, 0
    %v296 = vcvt.s32.f32 %v292
    %v297 = vcvt.s32.f32 %v293
    %v298 = vcvt.s32.f32 %v294
    %v299 = vcvt.s32.f32 %v295
    %300 = vmatpush.msra.mxu0 %v124
    %301 = vmatpush.msra.mxu0 %v122
    %302 = vmatpush.msra.mxu0 %v120
    %303 = vmatpush.msra.mxu0 %v118
    %304 = vmatpush.msra.mxu0 %v116
    %305 = vmatpush.msra.mxu0 %v114
    %306 = vmatpush.msra.mxu0 %v112
    %307 = vmatpush.msra.mxu0 %v110
    %308 = vmatpush.msra.mxu0 %v108
    %309 = vmatpush.msra.mxu0 %v106
    %310 = vmatpush.msra.mxu0 %v104
    %311 = vmatpush.msra.mxu0 %v102
    %312 = vmatpush.msra.mxu0 %v100
    %313 = vmatpush.msra.mxu0 %v98
    %314 = vmatpush.msra.mxu0 %v96
    %315 = vmatpush.msra.mxu0 %v94
    %316 = vmatmul.f32.gmra.mxu0 %v296
    %v317 = vpop.f32.mrf.mxu0
    %v318 = vadd.f32 0.0, %v317
    %319 = vmatmul.f32.gmra.mxu0 %v298
    %v320 = vpop.f32.mrf.mxu0
    %v321 = vadd.f32 0.0, %v320
    %322 = vdwg.mxu0
    %323 = vmatpush.msra.mxu0 %v156
    %324 = vmatpush.msra.mxu0 %v154
    %325 = vmatpush.msra.mxu0 %v152
    %326 = vmatpush.msra.mxu0 %v150
    %327 = vmatpush.msra.mxu0 %v148
    %328 = vmatpush.msra.mxu0 %v146
    %329 = vmatpush.msra.mxu0 %v144
    %330 = vmatpush.msra.mxu0 %v142
    %331 = vmatpush.msra.mxu0 %v140
    %332 = vmatpush.msra.mxu0 %v138
    %333 = vmatpush.msra.mxu0 %v136
    %334 = vmatpush.msra.mxu0 %v134
    %335 = vmatpush.msra.mxu0 %v132
    %336 = vmatpush.msra.mxu0 %v130
    %337 = vmatpush.msra.mxu0 %v128
    %338 = vmatpush.msra.mxu0 %v126
    %339 = vmatmul.f32.gmra.mxu0 %v297
    %v340 = vpop.f32.mrf.mxu0
    %v341 = vadd.f32 %v318, %v340
    %342 = vmatmul.f32.gmra.mxu0 %v299
    %v343 = vpop.f32.mrf.mxu0
    %v344 = vadd.f32 %v321, %v343
    %345 = vdwg.mxu0
    %346 = vmatpush.msra.mxu0 %v125
    %347 = vmatpush.msra.mxu0 %v123
    %348 = vmatpush.msra.mxu0 %v121
    %349 = vmatpush.msra.mxu0 %v119
    %350 = vmatpush.msra.mxu0 %v117
    %351 = vmatpush.msra.mxu0 %v115
    %352 = vmatpush.msra.mxu0 %v113
    %353 = vmatpush.msra.mxu0 %v111
    %354 = vmatpush.msra.mxu0 %v109
    %355 = vmatpush.msra.mxu0 %v107
    %356 = vmatpush.msra.mxu0 %v105
    %357 = vmatpush.msra.mxu0 %v103
    %358 = vmatpush.msra.mxu0 %v101
    %359 = vmatpush.msra.mxu0 %v99
    %360 = vmatpush.msra.mxu0 %v97
    %361 = vmatpush.msra.mxu0 %v95
    %362 = vmatmul.f32.gmra.mxu0 %v296
    %v363 = vpop.f32.mrf.mxu0
    %v364 = vadd.f32 0.0, %v363
    %365 = vmatmul.f32.gmra.mxu0 %v298
    %v366 = vpop.f32.mrf.mxu0
    %v367 = vadd.f32 0.0, %v366
    %368 = vdwg.mxu0
    %369 = vmatpush.msra.mxu0 %v157
    %370 = vmatpush.msra.mxu0 %v155
    %371 = vmatpush.msra.mxu0 %v153
    %372 = vmatpush.msra.mxu0 %v151
    %373 = vmatpush.msra.mxu0 %v149
    %374 = vmatpush.msra.mxu0 %v147
    %375 = vmatpush.msra.mxu0 %v145
    %376 = vmatpush.msra.mxu0 %v143
    %377 = vmatpush.msra.mxu0 %v141
    %378 = vmatpush.msra.mxu0 %v139
    %379 = vmatpush.msra.mxu0 %v137
    %380 = vmatpush.msra.mxu0 %v135
    %381 = vmatpush.msra.mxu0 %v133
    %382 = vmatpush.msra.mxu0 %v131
    %383 = vmatpush.msra.mxu0 %v129
    %384 = vmatpush.msra.mxu0 %v127
    %385 = vmatmul.f32.gmra.mxu0 %v297
    %v386 = vpop.f32.mrf.mxu0
    %v387 = vadd.f32 %v364, %v386
    %388 = vmatmul.f32.gmra.mxu0 %v299
    %v389 = vpop.f32.mrf.mxu0
    %v390 = vadd.f32 %v367, %v389
    %391 = vdwg.mxu0
    %v392 = vld [vmem:[#allocation5 + $0x100] sm:$0xff]
    %v393 = vld [vmem:[#allocation5 + $0x108] sm:$0xff]
    %v394 = vld [vmem:[#allocation5 + $0x110] sm:$0xff]
    %v395 = vld [vmem:[#allocation5 + $0x118] sm:$0xff]
    %v396 = vld [vmem:[#allocation5 + $0x120] sm:$0xff]
    %v397 = vld [vmem:[#allocation5 + $0x128] sm:$0xff]
    %v398 = vld [vmem:[#allocation5 + $0x130] sm:$0xff]
    %v399 = vld [vmem:[#allocation5 + $0x138] sm:$0xff]
    %v400 = vld [vmem:[#allocation5 + $0x140] sm:$0xff]
    %v401 = vld [vmem:[#allocation5 + $0x148] sm:$0xff]
    %v402 = vld [vmem:[#allocation5 + $0x150] sm:$0xff]
    %v403 = vld [vmem:[#allocation5 + $0x158] sm:$0xff]
    %v404 = vld [vmem:[#allocation5 + $0x160] sm:$0xff]
    %v405 = vld [vmem:[#allocation5 + $0x168] sm:$0xff]
    %v406 = vld [vmem:[#allocation5 + $0x170] sm:$0xff]
    %v407 = vld [vmem:[#allocation5 + $0x178] sm:$0xff]
    %v408 = vld [vmem:[#allocation5 + $0x180] sm:$0xff]
    %v409 = vld [vmem:[#allocation5 + $0x188] sm:$0xff]
    %v410 = vld [vmem:[#allocation5 + $0x190] sm:$0xff]
    %v411 = vld [vmem:[#allocation5 + $0x198] sm:$0xff]
    %v412 = vld [vmem:[#allocation5 + $0x1a0] sm:$0xff]
    %v413 = vld [vmem:[#allocation5 + $0x1a8] sm:$0xff]
    %v414 = vld [vmem:[#allocation5 + $0x1b0] sm:$0xff]
    %v415 = vld [vmem:[#allocation5 + $0x1b8] sm:$0xff]
    %v416 = vld [vmem:[#allocation5 + $0x1c0] sm:$0xff]
    %v417 = vld [vmem:[#allocation5 + $0x1c8] sm:$0xff]
    %v418 = vld [vmem:[#allocation5 + $0x1d0] sm:$0xff]
    %v419 = vld [vmem:[#allocation5 + $0x1d8] sm:$0xff]
    %v420 = vld [vmem:[#allocation5 + $0x1e0] sm:$0xff]
    %v421 = vld [vmem:[#allocation5 + $0x1e8] sm:$0xff]
    %v422 = vld [vmem:[#allocation5 + $0x1f0] sm:$0xff]
    %v423 = vld [vmem:[#allocation5 + $0x1f8] sm:$0xff]
    %424 = vmatpush.msra.mxu0 %v407
    %425 = vmatpush.msra.mxu0 %v406
    %426 = vmatpush.msra.mxu0 %v405
    %427 = vmatpush.msra.mxu0 %v404
    %428 = vmatpush.msra.mxu0 %v403
    %429 = vmatpush.msra.mxu0 %v402
    %430 = vmatpush.msra.mxu0 %v401
    %431 = vmatpush.msra.mxu0 %v400
    %432 = vmatpush.msra.mxu0 %v399
    %433 = vmatpush.msra.mxu0 %v398
    %434 = vmatpush.msra.mxu0 %v397
    %435 = vmatpush.msra.mxu0 %v396
    %436 = vmatpush.msra.mxu0 %v395
    %437 = vmatpush.msra.mxu0 %v394
    %438 = vmatpush.msra.mxu0 %v393
    %439 = vmatpush.msra.mxu0 %v392
    %440 = vmatmul.f32.gmra.mxu0 %v341
    %v441 = vpop.f32.mrf.mxu0
    %v442 = vadd.f32 0.0, %v441
    %443 = vmatmul.f32.gmra.mxu0 %v344
    %v444 = vpop.f32.mrf.mxu0
    %v445 = vadd.f32 0.0, %v444
    %446 = vdwg.mxu0
    %447 = vmatpush.msra.mxu0 %v423
    %448 = vmatpush.msra.mxu0 %v422
    %449 = vmatpush.msra.mxu0 %v421
    %450 = vmatpush.msra.mxu0 %v420
    %451 = vmatpush.msra.mxu0 %v419
    %452 = vmatpush.msra.mxu0 %v418
    %453 = vmatpush.msra.mxu0 %v417
    %454 = vmatpush.msra.mxu0 %v416
    %455 = vmatpush.msra.mxu0 %v415
    %456 = vmatpush.msra.mxu0 %v414
    %457 = vmatpush.msra.mxu0 %v413
    %458 = vmatpush.msra.mxu0 %v412
    %459 = vmatpush.msra.mxu0 %v411
    %460 = vmatpush.msra.mxu0 %v410
    %461 = vmatpush.msra.mxu0 %v409
    %462 = vmatpush.msra.mxu0 %v408
    %463 = vmatmul.f32.gmra.mxu0 %v387
    %v464 = vpop.f32.mrf.mxu0
    %v465 = vadd.f32 %v442, %v464
    %466 = vmatmul.f32.gmra.mxu0 %v390
    %v467 = vpop.f32.mrf.mxu0
    %v468 = vadd.f32 %v445, %v467
    %469 = vdwg.mxu0
    %470 = vmatpush.msra.mxu0 %v265
    %471 = vmatpush.msra.mxu0 %v264
    %472 = vmatpush.msra.mxu0 %v263
    %473 = vmatpush.msra.mxu0 %v262
    %474 = vmatpush.msra.mxu0 %v261
    %475 = vmatpush.msra.mxu0 %v260
    %476 = vmatpush.msra.mxu0 %v259
    %477 = vmatpush.msra.mxu0 %v258
    %478 = vmatpush.msra.mxu0 %v257
    %479 = vmatpush.msra.mxu0 %v256
    %480 = vmatpush.msra.mxu0 %v255
    %481 = vmatpush.msra.mxu0 %v254
    %482 = vmatpush.msra.mxu0 %v253
    %483 = vmatpush.msra.mxu0 %v252
    %484 = vmatpush.msra.mxu0 %v251
    %485 = vmatpush.msra.mxu0 %v250
    %486 = vmatmul.f32.gmra.mxu0 %v199
    %v487 = vpop.f32.mrf.mxu0
    %v488 = vadd.f32 %v465, %v487
    %489 = vmatmul.f32.gmra.mxu0 %v202
    %v490 = vpop.f32.mrf.mxu0
    %v491 = vadd.f32 %v468, %v490
    %492 = vdwg.mxu0
    %493 = vmatpush.msra.mxu0 %v281
    %494 = vmatpush.msra.mxu0 %v280
    %495 = vmatpush.msra.mxu0 %v279
    %496 = vmatpush.msra.mxu0 %v278
    %497 = vmatpush.msra.mxu0 %v277
    %498 = vmatpush.msra.mxu0 %v276
    %499 = vmatpush.msra.mxu0 %v275
    %500 = vmatpush.msra.mxu0 %v274
    %501 = vmatpush.msra.mxu0 %v273
    %502 = vmatpush.msra.mxu0 %v272
    %503 = vmatpush.msra.mxu0 %v271
    %504 = vmatpush.msra.mxu0 %v270
    %505 = vmatpush.msra.mxu0 %v269
    %506 = vmatpush.msra.mxu0 %v268
    %507 = vmatpush.msra.mxu0 %v267
    %508 = vmatpush.msra.mxu0 %v266
    %509 = vmatmul.f32.gmra.mxu0 %v245
    %v510 = vpop.f32.mrf.mxu0
    %v511 = vadd.f32 %v488, %v510
    %512 = vmatmul.f32.gmra.mxu0 %v248
    %v513 = vpop.f32.mrf.mxu0
    %v514 = vadd.f32 %v491, %v513
    %515 = vdwg.mxu0
    %v516 = vld [vmem:[%s3] sm:$0x1]
    %v518 = vperm.slane %v516, 0
    %v520 = vadd.f32 %v511, %v518
    %v521 = vadd.f32 %v514, %v518
    %v522 = vmax.f32 %v520, 0.0
    %v523 = vmax.f32 %v521, 0.0
    %v524 = vld [vmem:[#allocation7] sm:$0xff]
    %v525 = vld [vmem:[#allocation7 + $0x8] sm:$0xff]
    %v526 = vld [vmem:[#allocation7 + $0x10] sm:$0xff]
    %v527 = vld [vmem:[#allocation7 + $0x18] sm:$0xff]
    %v528 = vld [vmem:[#allocation7 + $0x20] sm:$0xff]
    %v529 = vld [vmem:[#allocation7 + $0x28] sm:$0xff]
    %v530 = vld [vmem:[#allocation7 + $0x30] sm:$0xff]
    %v531 = vld [vmem:[#allocation7 + $0x38] sm:$0xff]
    %v532 = vld [vmem:[#allocation7 + $0x40] sm:$0xff]
    %v533 = vld [vmem:[#allocation7 + $0x48] sm:$0xff]
    %v534 = vld [vmem:[#allocation7 + $0x50] sm:$0xff]
    %v535 = vld [vmem:[#allocation7 + $0x58] sm:$0xff]
    %v536 = vld [vmem:[#allocation7 + $0x60] sm:$0xff]
    %v537 = vld [vmem:[#allocation7 + $0x68] sm:$0xff]
    %v538 = vld [vmem:[#allocation7 + $0x70] sm:$0xff]
    %v539 = vld [vmem:[#allocation7 + $0x78] sm:$0xff]
    %v540 = vld [vmem:[#allocation7 + $0x80] sm:$0xff]
    %v541 = vld [vmem:[#allocation7 + $0x88] sm:$0xff]
    %v542 = vld [vmem:[#allocation7 + $0x90] sm:$0xff]
    %v543 = vld [vmem:[#allocation7 + $0x98] sm:$0xff]
    %v544 = vld [vmem:[#allocation7 + $0xa0] sm:$0xff]
    %v545 = vld [vmem:[#allocation7 + $0xa8] sm:$0xff]
    %v546 = vld [vmem:[#allocation7 + $0xb0] sm:$0xff]
    %v547 = vld [vmem:[#allocation7 + $0xb8] sm:$0xff]
    %v548 = vld [vmem:[#allocation7 + $0xc0] sm:$0xff]
    %v549 = vld [vmem:[#allocation7 + $0xc8] sm:$0xff]
    %v550 = vld [vmem:[#allocation7 + $0xd0] sm:$0xff]
    %v551 = vld [vmem:[#allocation7 + $0xd8] sm:$0xff]
    %v552 = vld [vmem:[#allocation7 + $0xe0] sm:$0xff]
    %v553 = vld [vmem:[#allocation7 + $0xe8] sm:$0xff]
    %v554 = vld [vmem:[#allocation7 + $0xf0] sm:$0xff]
    %v555 = vld [vmem:[#allocation7 + $0xf8] sm:$0xff]
    %v556 = vld [vmem:[%s5] sm:$0x3]
    %v558 = vperm.slane %v556, 0
    %v559 = vperm.slane %v556, 1
    %562 = vmatpush.msra.mxu0 %v554
    %563 = vmatpush.msra.mxu0 %v552
    %564 = vmatpush.msra.mxu0 %v550
    %565 = vmatpush.msra.mxu0 %v548
    %566 = vmatpush.msra.mxu0 %v546
    %567 = vmatpush.msra.mxu0 %v544
    %568 = vmatpush.msra.mxu0 %v542
    %569 = vmatpush.msra.mxu0 %v540
    %570 = vmatpush.msra.mxu0 %v538
    %571 = vmatpush.msra.mxu0 %v536
    %572 = vmatpush.msra.mxu0 %v534
    %573 = vmatpush.msra.mxu0 %v532
    %574 = vmatpush.msra.mxu0 %v530
    %575 = vmatpush.msra.mxu0 %v528
    %576 = vmatpush.msra.mxu0 %v526
    %577 = vmatpush.msra.mxu0 %v524
    %578 = vmatmul.f32.gmra.mxu0 %v522
    %v579 = vpop.f32.mrf.mxu0
    %v580 = vadd.f32 %v558, %v579
    %581 = vmatmul.f32.gmra.mxu0 %v523
    %v582 = vpop.f32.mrf.mxu0
    %v583 = vadd.f32 %v558, %v582
    %584 = vdwg.mxu0
    %585 = vmatpush.msra.mxu0 %v555
    %586 = vmatpush.msra.mxu0 %v553
    %587 = vmatpush.msra.mxu0 %v551
    %588 = vmatpush.msra.mxu0 %v549
    %589 = vmatpush.msra.mxu0 %v547
    %590 = vmatpush.msra.mxu0 %v545
    %591 = vmatpush.msra.mxu0 %v543
    %592 = vmatpush.msra.mxu0 %v541
    %593 = vmatpush.msra.mxu0 %v539
    %594 = vmatpush.msra.mxu0 %v537
    %595 = vmatpush.msra.mxu0 %v535
    %596 = vmatpush.msra.mxu0 %v533
    %597 = vmatpush.msra.mxu0 %v531
    %598 = vmatpush.msra.mxu0 %v529
    %599 = vmatpush.msra.mxu0 %v527
    %600 = vmatpush.msra.mxu0 %v525
    %601 = vmatmul.f32.gmra.mxu0 %v522
    %v602 = vpop.f32.mrf.mxu0
    %v603 = vadd.f32 %v559, %v602
    %604 = vmatmul.f32.gmra.mxu0 %v523
    %v605 = vpop.f32.mrf.mxu0
    %v606 = vadd.f32 %v559, %v605
    %607 = vdwg.mxu0
    %v608 = vmax.f32 %v580, %v603
    %609 = vmax.xlane.f32.xlu0 %v608
    %v610 = vpop.xlane.xlu0 %609
    %v611 = vmax.f32 %v583, %v606
    %612 = vmax.xlane.f32.xlu0 %v611
    %v613 = vpop.xlane.xlu0 %612
    %v614 = vsub.f32 %v580, %v610
    %v615 = vsub.f32 %v603, %v610
    %v616 = vsub.f32 %v583, %v613
    %v617 = vsub.f32 %v606, %v613
    %v618 = vmul.f32 %v614, 1.442695
    %v619 = vpow.pop %v618
    %v620 = vmul.f32 %v615, 1.442695
    %v621 = vpow.pop %v620
    %v622 = vmul.f32 %v616, 1.442695
    %v623 = vpow.pop %v622
    %v624 = vmul.f32 %v617, 1.442695
    %v625 = vpow.pop %v624
    %v626 = vadd.f32 %v619, %v621
    %627 = vadd.xlane.f32.xlu0 %v626
    %v628 = vpop.xlane.xlu0 %627
    %v629 = vadd.f32 %v623, %v625
    %630 = vadd.xlane.f32.xlu0 %v629
    %v631 = vpop.xlane.xlu0 %630
    %v632 = vlog2.pop %v628
    %v633 = vmul.f32 %v632, 0.6931472
    %v634 = vlog2.pop %v631
    %v635 = vmul.f32 %v634, 0.6931472
    %v636 = vsub.f32 %v614, %v633
    %v637 = vsub.f32 %v615, %v633
    %v638 = vsub.f32 %v616, %v635
    %v639 = vsub.f32 %v617, %v635
    %640 = vst [vmem:[#allocation8] sm:$0xff] %v636
    %641 = vst [vmem:[#allocation8 + $0x8] sm:$0xff] %v637
    %642 = vst [vmem:[#allocation8 + $0x10] sm:$0xff] %v638
    %643 = vst [vmem:[#allocation8 + $0x18] sm:$0xff] %v639
    // Predicated region
    $region38: #{youtube_nn_forward.1} parent=1 // pred_check
      _
    $region39: #{youtube_nn_forward.1} parent=1 // pred_check_branch
      %645 = sbr.rel (0) target = $region41
    $region40: #{youtube_nn_forward.1} parent=1 // pred_region
      %647 = vsyncadd [#allocation4], 0
      %s648 = sshll.u32 [#allocation8], 4
      %s649 = int_to_ptr.vmem [resolvable:$true] %s648
      %s650 = sshll.u32 %s6, 4
      %s651 = int_to_ptr.hbm [resolvable:$true] %s650
      %656 = dma.vmem_to_hbm [thread:$0]  %s649, 512, %s651, [#allocation4], 256, 256, 16
    $region41: #{youtube_nn_forward.1} parent=1 // pred_fallthru
      _
    // Predicated region
    $region42: #{youtube_nn_forward.1} parent=1 // pred_check
      _
    $region43: #{youtube_nn_forward.1} parent=1 // pred_check_branch
      %658 = sbr.rel (0) target = $region45
    $region44: #{youtube_nn_forward.1} parent=1 // pred_region
      %660 = dma.done [#allocation4], 512
    $region45: #{youtube_nn_forward.1} parent=1 // pred_fallthru
      _
    %661 = vsyncpa [#allocation3], 1
    %662 = vsyncpa [#allocation6], 1
    %663 = vsyncpa [#allocation4], 1

</llo_original>
